<compile_context>
chip_gen: v7x
topology: tpu7x:2x2x1
jax: 0.10.0
libtpu: 0.0.40
codegen_flags: <defaults>
</compile_context>

<pallas_src>
import jax
import jax.numpy as jnp
from jax.experimental import pallas as pl
from jax.experimental.pallas import tpu as pltpu


def _critic_kernel(s_ref, a_ref, w1s_ref, w1a_ref, b1_ref, w2_ref, b2_ref,
                   w3_ref, b3_ref, q_ref):
    # fc1 + relu, with torch.cat([state, action], dim=1) folded into two dots.
    h1 = jnp.dot(s_ref[...], w1s_ref[...], preferred_element_type=jnp.float32)
    h1 = h1 + jnp.dot(a_ref[...], w1a_ref[...], preferred_element_type=jnp.float32)
    h1 = jnp.maximum(h1 + b1_ref[...], 0.0)

    # fc2 + relu
    h2 = jnp.dot(h1, w2_ref[...], preferred_element_type=jnp.float32)
    h2 = jnp.maximum(h2 + b2_ref[...], 0.0)

    # q1 head (N=1): VPU multiply + lane reduce instead of an N=1 MXU matmul.
    # b3 is read as a scalar from SMEM; the result is stored lane-dense (1, TB).
    q = jnp.sum(h2 * w3_ref[...], axis=-1) + b3_ref[0, 0]
    q_ref[...] = q.reshape(1, -1)


def td3_critic_forward(state, action, params, *, block_b=512):
    """Pallas forward for TD3CriticNetwork. Returns q of shape [B, 1]."""
    w1s, w1a, b1, w2, b2, w3, b3 = params
    B, input_dims = state.shape
    n_actions = action.shape[1]
    fc1_dims = w1s.shape[1]
    fc2_dims = w2.shape[1]

    # Batch tiling: TB rows per grid step (whole batch if it is small).
    if B <= block_b:
        TB, Bp = B, B
    else:
        TB = block_b
        Bp = pl.cdiv(B, TB) * TB
        if Bp != B:
            pad = Bp - B
            state = jnp.pad(state, ((0, pad), (0, 0)))
            action = jnp.pad(action, ((0, pad), (0, 0)))

    grid = (Bp // TB,)
    const = lambda i: (0, 0)

    in_specs = [
        pl.BlockSpec((TB, input_dims), lambda i: (i, 0)),   # state stream
        pl.BlockSpec((TB, n_actions), lambda i: (i, 0)),    # action stream
        pl.BlockSpec((input_dims, fc1_dims), const),        # w1 (state rows)
        pl.BlockSpec((n_actions, fc1_dims), const),         # w1 (action rows)
        pl.BlockSpec((1, fc1_dims), const),                 # b1
        pl.BlockSpec((fc1_dims, fc2_dims), const),          # w2
        pl.BlockSpec((1, fc2_dims), const),                 # b2
        pl.BlockSpec((1, fc2_dims), const),                 # w3 as a row vector
        pl.BlockSpec(memory_space=pltpu.MemorySpace.SMEM),  # b3 scalar (1, 1)
    ]
    out_specs = pl.BlockSpec((1, TB), lambda i: (0, i))     # lane-dense q row

    d_in = input_dims + n_actions
    n_param = sum(int(p.size) for p in (w1s, w1a, b1, w2, b2, w3, b3))
    cost = pl.CostEstimate(
        flops=2 * Bp * (d_in * fc1_dims + fc1_dims * fc2_dims + fc2_dims),
        transcendentals=0,
        bytes_accessed=Bp * (d_in + 1) * 4 + n_param * 4,
    )

    q_row = pl.pallas_call(
        _critic_kernel,
        out_shape=jax.ShapeDtypeStruct((1, Bp), jnp.float32),
        grid=grid,
        in_specs=in_specs,
        out_specs=out_specs,
        compiler_params=pltpu.CompilerParams(
            dimension_semantics=("parallel",)),
        cost_estimate=cost,
    )(state, action, w1s, w1a, b1, w2, b2, w3, b3)

    q = q_row.reshape(Bp, 1)
    return q[:B] if Bp != B else q


def init_params(key, input_dims, n_actions, fc1_dims, fc2_dims):
    """PyTorch nn.Linear-style init: U[-1/sqrt(fan_in), 1/sqrt(fan_in)]."""
    d_in = input_dims + n_actions
    ks = jax.random.split(key, 6)

    def lin(kw, kb, fan_in, fan_out):
        bound = 1.0 / jnp.sqrt(jnp.float32(fan_in))
        w = jax.random.uniform(kw, (fan_in, fan_out), jnp.float32, -bound, bound)
        b = jax.random.uniform(kb, (1, fan_out), jnp.float32, -bound, bound)
        return w, b

    w1, b1 = lin(ks[0], ks[1], d_in, fc1_dims)
    w2, b2 = lin(ks[2], ks[3], fc1_dims, fc2_dims)
    w3, b3 = lin(ks[4], ks[5], fc2_dims, 1)
    # Split fc1 weight into the state / action row blocks (concat fused in-kernel).
    w1s, w1a = w1[:input_dims], w1[input_dims:]
    w3_row = w3.T          # (1, fc2) row vector for the VPU head
    return (w1s, w1a, b1, w2, b2, w3_row, b3)   # b3 has shape (1, 1)


def reference_forward(state, action, params):
    w1s, w1a, b1, w2, b2, w3, b3 = params
    hi = jax.lax.Precision.HIGHEST
    x = jnp.concatenate([state, action], axis=1)
    w1 = jnp.concatenate([w1s, w1a], axis=0)
    h1 = jnp.maximum(jnp.dot(x, w1, precision=hi) + b1, 0.0)
    h2 = jnp.maximum(jnp.dot(h1, w2, precision=hi) + b2, 0.0)
    return jnp.dot(h2, w3.T, precision=hi) + b3


if __name__ == "__main__":
    # Cartpole-ish critic sizes.
    input_dims, n_actions, fc1_dims, fc2_dims = 8, 2, 32, 32

    key = jax.random.PRNGKey(0)
    k_s, k_a, k_p, k_s2, k_a2 = jax.random.split(key, 5)
    params = init_params(k_p, input_dims, n_actions, fc1_dims, fc2_dims)

    # Small batch (single grid step, block == full array).
    batch = 4
    state = jax.random.normal(k_s, (batch, input_dims), jnp.float32)
    action = jax.random.normal(k_a, (batch, n_actions), jnp.float32)
    q = jax.block_until_ready(td3_critic_forward(state, action, params))
    q_ref = reference_forward(state, action, params)
    assert q.shape == (batch, 1)
    assert jnp.allclose(q, q_ref, atol=1e-5, rtol=1e-5), (q, q_ref)

    # Larger, non-divisible batch -> exercises the gridded, padded,
    # multi-step pipelined path (grid=(3,), TB=128).
    batch2 = 300
    state2 = jax.random.normal(k_s2, (batch2, input_dims), jnp.float32)
    action2 = jax.random.normal(k_a2, (batch2, n_actions), jnp.float32)
    q2 = jax.block_until_ready(
        td3_critic_forward(state2, action2, params, block_b=128))
    q2_ref = reference_forward(state2, action2, params)
    assert q2.shape == (batch2, 1)
    assert jnp.allclose(q2, q2_ref, atol=1e-5, rtol=1e-5)

    print("KERNEL_OK")
</pallas_src>

<mosaic_0001>
module attributes {stable_mosaic.version = 11 : i64} {
  func.func @_critic_kernel(%arg0: i32, %arg1: memref<4x8xf32, #tpu.memory_space<vmem>>, %arg2: memref<4x2xf32, #tpu.memory_space<vmem>>, %arg3: memref<8x32xf32, #tpu.memory_space<vmem>>, %arg4: memref<2x32xf32, #tpu.memory_space<vmem>>, %arg5: memref<1x32xf32, #tpu.memory_space<vmem>>, %arg6: memref<32x32xf32, #tpu.memory_space<vmem>>, %arg7: memref<1x32xf32, #tpu.memory_space<vmem>>, %arg8: memref<1x32xf32, #tpu.memory_space<vmem>>, %arg9: memref<1x1xf32, #tpu.memory_space<smem>>, %arg10: memref<1x4xf32, #tpu.memory_space<vmem>>) attributes {dimension_semantics = [#tpu.dimension_semantics<parallel>], iteration_bounds = array<i64: 1>, scalar_prefetch = 0 : i64, scratch_operands = 0 : i64, tpu.core_type = #tpu.core_type<tc>, window_params = [{transform_indices = @transform_0, window_bounds = array<i64: 4, 8>}, {transform_indices = @transform_1, window_bounds = array<i64: 4, 2>}, {pipeline_mode = #tpu.pipeline_mode<synchronous>, transform_indices = @transform_2, window_bounds = array<i64: 8, 32>}, {pipeline_mode = #tpu.pipeline_mode<synchronous>, transform_indices = @transform_3, window_bounds = array<i64: 2, 32>}, {pipeline_mode = #tpu.pipeline_mode<synchronous>, transform_indices = @transform_4, window_bounds = array<i64: 1, 32>}, {pipeline_mode = #tpu.pipeline_mode<synchronous>, transform_indices = @transform_5, window_bounds = array<i64: 32, 32>}, {pipeline_mode = #tpu.pipeline_mode<synchronous>, transform_indices = @transform_6, window_bounds = array<i64: 1, 32>}, {pipeline_mode = #tpu.pipeline_mode<synchronous>, transform_indices = @transform_7, window_bounds = array<i64: 1, 32>}, {transform_indices = @transform_8, window_bounds = array<i64: 1, 1>}, {transform_indices = @transform_9, window_bounds = array<i64: 1, 4>}]} {
    %c0 = arith.constant 0 : index
    %c0_0 = arith.constant 0 : index
    %0 = vector.load %arg1[%c0, %c0_0] : memref<4x8xf32, #tpu.memory_space<vmem>>, vector<4x8xf32>
    %c0_1 = arith.constant 0 : index
    %c0_2 = arith.constant 0 : index
    %1 = vector.load %arg3[%c0_1, %c0_2] : memref<8x32xf32, #tpu.memory_space<vmem>>, vector<8x32xf32>
    %cst = arith.constant dense<0.000000e+00> : vector<4x32xf32>
    %2 = tpu.matmul %0, %1, %cst {dimension_numbers = #tpu.dot_dimension_numbers<[1], [0], [0], [1], [0, 0, 1, 1], [], []>} : vector<4x8xf32>, vector<8x32xf32>, vector<4x32xf32> -> vector<4x32xf32>
    %c0_3 = arith.constant 0 : index
    %c0_4 = arith.constant 0 : index
    %3 = vector.load %arg2[%c0_3, %c0_4] : memref<4x2xf32, #tpu.memory_space<vmem>>, vector<4x2xf32>
    %c0_5 = arith.constant 0 : index
    %c0_6 = arith.constant 0 : index
    %4 = vector.load %arg4[%c0_5, %c0_6] : memref<2x32xf32, #tpu.memory_space<vmem>>, vector<2x32xf32>
    %cst_7 = arith.constant dense<0.000000e+00> : vector<4x32xf32>
    %5 = tpu.matmul %3, %4, %cst_7 {dimension_numbers = #tpu.dot_dimension_numbers<[1], [0], [0], [1], [0, 0, 1, 1], [], []>} : vector<4x2xf32>, vector<2x32xf32>, vector<4x32xf32> -> vector<4x32xf32>
    %6 = arith.addf %2, %5 : vector<4x32xf32>
    %c0_8 = arith.constant 0 : index
    %c0_9 = arith.constant 0 : index
    %7 = vector.load %arg5[%c0_8, %c0_9] : memref<1x32xf32, #tpu.memory_space<vmem>>, vector<1x32xf32>
    %8 = vector.broadcast %7 : vector<1x32xf32> to vector<4x32xf32>
    %9 = arith.addf %6, %8 : vector<4x32xf32>
    %cst_10 = arith.constant 0.000000e+00 : f32
    %10 = vector.broadcast %cst_10 : f32 to vector<4x32xf32>
    %11 = arith.maximumf %9, %10 : vector<4x32xf32>
    %c0_11 = arith.constant 0 : index
    %c0_12 = arith.constant 0 : index
    %12 = vector.load %arg6[%c0_11, %c0_12] : memref<32x32xf32, #tpu.memory_space<vmem>>, vector<32x32xf32>
    %cst_13 = arith.constant dense<0.000000e+00> : vector<4x32xf32>
    %13 = tpu.matmul %11, %12, %cst_13 {dimension_numbers = #tpu.dot_dimension_numbers<[1], [0], [0], [1], [0, 0, 1, 1], [], []>} : vector<4x32xf32>, vector<32x32xf32>, vector<4x32xf32> -> vector<4x32xf32>
    %c0_14 = arith.constant 0 : index
    %c0_15 = arith.constant 0 : index
    %14 = vector.load %arg7[%c0_14, %c0_15] : memref<1x32xf32, #tpu.memory_space<vmem>>, vector<1x32xf32>
    %15 = vector.broadcast %14 : vector<1x32xf32> to vector<4x32xf32>
    %16 = arith.addf %13, %15 : vector<4x32xf32>
    %cst_16 = arith.constant 0.000000e+00 : f32
    %17 = vector.broadcast %cst_16 : f32 to vector<4x32xf32>
    %18 = arith.maximumf %16, %17 : vector<4x32xf32>
    %c0_17 = arith.constant 0 : index
    %c0_18 = arith.constant 0 : index
    %19 = vector.load %arg8[%c0_17, %c0_18] : memref<1x32xf32, #tpu.memory_space<vmem>>, vector<1x32xf32>
    %20 = vector.broadcast %19 : vector<1x32xf32> to vector<4x32xf32>
    %21 = arith.mulf %18, %20 : vector<4x32xf32>
    %cst_19 = arith.constant dense<0.000000e+00> : vector<4xf32>
    %22 = vector.multi_reduction <add>, %21, %cst_19 [1] : vector<4x32xf32> to vector<4xf32>
    %c0_20 = arith.constant 0 : index
    %c0_21 = arith.constant 0 : index
    %23 = memref.load %arg9[%c0_20, %c0_21] : memref<1x1xf32, #tpu.memory_space<smem>>
    %24 = vector.broadcast %23 : f32 to vector<4xf32>
    %25 = arith.addf %22, %24 : vector<4xf32>
    %26 = vector.shape_cast %25 : vector<4xf32> to vector<1x4xf32>
    %c0_22 = arith.constant 0 : index
    %c0_23 = arith.constant 0 : index
    %27 = vector.load %arg10[%c0_22, %c0_23] : memref<1x4xf32, #tpu.memory_space<vmem>>, vector<1x4xf32>
    tpu.vector_store %arg10[%c0_22, %c0_23], %26 {strides = array<i32>} : memref<1x4xf32, #tpu.memory_space<vmem>>, vector<1x4xf32>,
    return
  }
  func.func @transform_0(%arg0: i32) -> (i32, i32) {
    %c0_i32 = arith.constant 0 : i32
    %c0_i32_0 = arith.constant 0 : i32
    return %arg0, %c0_i32 : i32, i32
  }
  func.func @transform_1(%arg0: i32) -> (i32, i32) {
    %c0_i32 = arith.constant 0 : i32
    %c0_i32_0 = arith.constant 0 : i32
    return %arg0, %c0_i32 : i32, i32
  }
  func.func @transform_2(%arg0: i32) -> (i32, i32) {
    %c0_i32 = arith.constant 0 : i32
    %c0_i32_0 = arith.constant 0 : i32
    %c0_i32_1 = arith.constant 0 : i32
    return %c0_i32, %c0_i32_0 : i32, i32
  }
  func.func @transform_3(%arg0: i32) -> (i32, i32) {
    %c0_i32 = arith.constant 0 : i32
    %c0_i32_0 = arith.constant 0 : i32
    %c0_i32_1 = arith.constant 0 : i32
    return %c0_i32, %c0_i32_0 : i32, i32
  }
  func.func @transform_4(%arg0: i32) -> (i32, i32) {
    %c0_i32 = arith.constant 0 : i32
    %c0_i32_0 = arith.constant 0 : i32
    %c0_i32_1 = arith.constant 0 : i32
    return %c0_i32, %c0_i32_0 : i32, i32
  }
  func.func @transform_5(%arg0: i32) -> (i32, i32) {
    %c0_i32 = arith.constant 0 : i32
    %c0_i32_0 = arith.constant 0 : i32
    %c0_i32_1 = arith.constant 0 : i32
    return %c0_i32, %c0_i32_0 : i32, i32
  }
  func.func @transform_6(%arg0: i32) -> (i32, i32) {
    %c0_i32 = arith.constant 0 : i32
    %c0_i32_0 = arith.constant 0 : i32
    %c0_i32_1 = arith.constant 0 : i32
    return %c0_i32, %c0_i32_0 : i32, i32
  }
  func.func @transform_7(%arg0: i32) -> (i32, i32) {
    %c0_i32 = arith.constant 0 : i32
    %c0_i32_0 = arith.constant 0 : i32
    %c0_i32_1 = arith.constant 0 : i32
    return %c0_i32, %c0_i32_0 : i32, i32
  }
  func.func @transform_8(%arg0: i32) -> (i32, i32) {
    %c0_i32 = arith.constant 0 : i32
    %c0_i32_0 = arith.constant 0 : i32
    %c0_i32_1 = arith.constant 0 : i32
    return %c0_i32, %c0_i32_0 : i32, i32
  }
  func.func @transform_9(%arg0: i32) -> (i32, i32) {
    %c0_i32 = arith.constant 0 : i32
    %c0_i32_0 = arith.constant 0 : i32
    return %c0_i32, %arg0 : i32, i32
  }
}

</mosaic_0001>

<llo_original>
// kernel: tpu_custom_call.1
$region0: #{tpu_custom_call.1}
  #allocation0 [shape = 'u32[]', space=smem, size = 0x4, offset = 0x4, fixed_abs, tag = 'smem constant byte address 0x4 - core index']
  #allocation1 [shape = 'u32[144,128]{1,0:T(1,128)}', space=vmem, size = 0x12000, scoped, tag = 'internal scratch']
  #allocation2 [shape = 'f32[1,1]{1,0:T(1,128)S(6)}', space=smem, size = 0x200, scoped, tag = 'scoped memory for tpu_custom_call.1']
  %s0 = inlined_call_operand.vmem [shape: f32[4,8], index: 0, kind: input, shape index: {}]
  %s1 = inlined_call_operand.vmem [shape: f32[4,2], index: 1, kind: input, shape index: {}]
  %s2 = inlined_call_operand.vmem [shape: f32[8,32], index: 2, kind: input, shape index: {}]
  %s3 = inlined_call_operand.vmem [shape: f32[2,32], index: 3, kind: input, shape index: {}]
  %s4 = inlined_call_operand.vmem [shape: f32[1,32], index: 4, kind: input, shape index: {}]
  %s5 = inlined_call_operand.hbm [shape: f32[32,32], index: 5, kind: input, shape index: {}]
  %s6 = inlined_call_operand.vmem [shape: f32[1,32], index: 6, kind: input, shape index: {}]
  %s7 = inlined_call_operand.vmem [shape: f32[1,32], index: 7, kind: input, shape index: {}]
  %s8 = inlined_call_operand.<no memory space> [shape: f32[1,1], index: 8, kind: input, shape index: {}]
  %s9 = inlined_call_operand.hbm [shape: f32[1,4], index: 9, kind: output, shape index: {}]
  %s10 = sld [smem:[#allocation0]]
  $region50: #{tpu_custom_call.1} parent=0
    _
  %s12 = ssub.s32 1, %s10
  %s13 = scalar_select 0, %s12, %s10
  %14 = sst [smem:[#allocation2]] %s8
  $region1: #{tpu_custom_call.1} parent=0
    #allocation3 [shape = 'u8[16384]{0}', space=vmem, size = 0x4000, scoped, tag = 'input window, operand 5, single buffered']
    #allocation4 [shape = 's32[1]{0}', space=sflag, size = 0x4, scoped, tag = 'scoped memory for tpu_custom_call.1']
    #allocation5 [shape = 's32[1]{0}', space=sflag, size = 0x4, scoped, tag = 'scoped memory for tpu_custom_call.1']
    #allocation6 [shape = 'u8[512]{0}', space=vmem, size = 0x400, scoped, tag = 'output window, operand 0, single buffered']
    %15 = vsyncpa [#allocation4], 0
    %16 = vsyncpa [#allocation5], 0
    // Predicated region
    $region2: #{tpu_custom_call.1} parent=1 // pred_check
      _
    $region3: #{tpu_custom_call.1} parent=1 // pred_check_branch
      %18 = sbr.rel (0) target = $region5
    $region4: #{tpu_custom_call.1} parent=1 // pred_region
      _
    $region5: #{tpu_custom_call.1} parent=1 // pred_fallthru
      _
    // Predicated region
    $region6: #{tpu_custom_call.1} parent=1 // pred_check
      _
    $region7: #{tpu_custom_call.1} parent=1 // pred_check_branch
      %20 = sbr.rel (0) target = $region9
    $region8: #{tpu_custom_call.1} parent=1 // pred_region
      _
    $region9: #{tpu_custom_call.1} parent=1 // pred_fallthru
      _
    // Predicated region
    $region10: #{tpu_custom_call.1} parent=1 // pred_check
      _
    $region11: #{tpu_custom_call.1} parent=1 // pred_check_branch
      %22 = sbr.rel (0) target = $region13
    $region12: #{tpu_custom_call.1} parent=1 // pred_region
      _
    $region13: #{tpu_custom_call.1} parent=1 // pred_fallthru
      _
    // Predicated region
    $region14: #{tpu_custom_call.1} parent=1 // pred_check
      _
    $region15: #{tpu_custom_call.1} parent=1 // pred_check_branch
      %24 = sbr.rel (0) target = $region17
    $region16: #{tpu_custom_call.1} parent=1 // pred_region
      _
    $region17: #{tpu_custom_call.1} parent=1 // pred_fallthru
      _
    // Predicated region
    $region18: #{tpu_custom_call.1} parent=1 // pred_check
      _
    $region19: #{tpu_custom_call.1} parent=1 // pred_check_branch
      %26 = sbr.rel (0) target = $region21
    $region20: #{tpu_custom_call.1} parent=1 // pred_region
      _
    $region21: #{tpu_custom_call.1} parent=1 // pred_fallthru
      _
    // Predicated region
    $region22: #{tpu_custom_call.1} parent=1 // pred_check
      _
    $region23: #{tpu_custom_call.1} parent=1 // pred_check_branch
      %28 = sbr.rel (0) target = $region25
    $region24: #{tpu_custom_call.1} parent=1 // pred_region
      %s30 = ssub.s32 512, 512
      %31 = vsyncadd [#allocation4], %s30
      %s32 = sshll.u32 [#allocation3], 4
      %s33 = int_to_ptr.vmem [resolvable:$true] %s32
      %38 = dma.hbm_to_vmem [thread:$0]  %s5, 512, %s33, [#allocation4], 128, 128, 8
    $region25: #{tpu_custom_call.1} parent=1 // pred_fallthru
      _
    // Predicated region
    $region26: #{tpu_custom_call.1} parent=1 // pred_check
      _
    $region27: #{tpu_custom_call.1} parent=1 // pred_check_branch
      %40 = sbr.rel (0) target = $region29
    $region28: #{tpu_custom_call.1} parent=1 // pred_region
      _
    $region29: #{tpu_custom_call.1} parent=1 // pred_fallthru
      _
    // Predicated region
    $region30: #{tpu_custom_call.1} parent=1 // pred_check
      _
    $region31: #{tpu_custom_call.1} parent=1 // pred_check_branch
      %42 = sbr.rel (0) target = $region33
    $region32: #{tpu_custom_call.1} parent=1 // pred_region
      _
    $region33: #{tpu_custom_call.1} parent=1 // pred_fallthru
      _
    // Predicated region
    $region34: #{tpu_custom_call.1} parent=1 // pred_check
      _
    $region35: #{tpu_custom_call.1} parent=1 // pred_check_branch
      %44 = sbr.rel (0) target = $region37
    $region36: #{tpu_custom_call.1} parent=1 // pred_region
      _
    $region37: #{tpu_custom_call.1} parent=1 // pred_fallthru
      _
    // Predicated region
    $region38: #{tpu_custom_call.1} parent=1 // pred_check
      _
    $region39: #{tpu_custom_call.1} parent=1 // pred_check_branch
      %46 = sbr.rel (0) target = $region41
    $region40: #{tpu_custom_call.1} parent=1 // pred_region
      %47 = dma.done [#allocation4], 512
    $region41: #{tpu_custom_call.1} parent=1 // pred_fallthru
      _
    %v48 = vld [vmem:[%s0] sm:$0xf]
    %v49 = vld [vmem:[%s2] sm:$0xff]
    %v50 = vld [vmem:[%s1] sm:$0xf]
    %v51 = vld [vmem:[%s3] sm:$0x3]
    %vm52 = vcmask 15360
    %v54 = vsel %vm52, %v50, 0
    %vm56 = vcmask 1041408
    %v58 = vsel %vm56, %v51, 0
    %60 = vmatprep.subr.mxu0 0.0
    %61 = vmatpush1.msra.mxu0 %v58
    %62 = vmatprep.subr.mxu0 0.0
    %63 = vmatpush1.msra.mxu0 0.0
    %64 = vmatprep.subr.mxu0 0.0
    %65 = vmatpush1.msra.mxu0 0.0
    %66 = vmatprep.subr.mxu0 0.0
    %67 = vmatpush1.msra.mxu0 0.0
    %68 = vmatprep.subr.mxu0 0.0
    %69 = vmatpush1.msra.mxu0 0.0
    %70 = vmatprep.subr.mxu0 0.0
    %71 = vmatpush1.msra.mxu0 0.0
    %72 = vmatprep.subr.mxu0 0.0
    %73 = vmatpush1.msra.mxu0 0.0
    %74 = vmatprep.subr.mxu0 0.0
    %75 = vmatpush1.msra.mxu0 0.0
    %76 = vmatprep.subr.mxu0 0.0
    %77 = vmatpush1.msra.mxu0 0.0
    %78 = vmatprep.subr.mxu0 0.0
    %79 = vmatpush1.msra.mxu0 0.0
    %80 = vmatprep.subr.mxu0 0.0
    %81 = vmatpush1.msra.mxu0 0.0
    %82 = vmatprep.subr.mxu0 0.0
    %83 = vmatpush1.msra.mxu0 0.0
    %84 = vmatprep.subr.mxu0 0.0
    %85 = vmatpush1.msra.mxu0 0.0
    %86 = vmatprep.subr.mxu0 0.0
    %87 = vmatpush1.msra.mxu0 0.0
    %88 = vmatprep.subr.mxu0 0.0
    %89 = vmatpush1.msra.mxu0 0.0
    %90 = vmatprep.subr.mxu0 0.0
    %91 = vmatpush1.msra.mxu0 0.0
    %92 = vmatprep.subr.mxu0 0.0
    %93 = vmatpush1.msra.mxu0 0.0
    %94 = vmatprep.subr.mxu0 0.0
    %95 = vmatpush1.msra.mxu0 0.0
    %96 = vmatprep.subr.mxu0 0.0
    %97 = vmatpush1.msra.mxu0 0.0
    %98 = vmatprep.subr.mxu0 0.0
    %99 = vmatpush1.msra.mxu0 0.0
    %100 = vmatprep.subr.mxu0 0.0
    %101 = vmatpush1.msra.mxu0 0.0
    %102 = vmatprep.subr.mxu0 0.0
    %103 = vmatpush1.msra.mxu0 0.0
    %104 = vmatprep.subr.mxu0 0.0
    %105 = vmatpush1.msra.mxu0 0.0
    %106 = vmatprep.subr.mxu0 0.0
    %107 = vmatpush1.msra.mxu0 0.0
    %108 = vmatprep.subr.mxu0 0.0
    %109 = vmatpush1.msra.mxu0 0.0
    %110 = vmatprep.subr.mxu0 0.0
    %111 = vmatpush1.msra.mxu0 0.0
    %112 = vmatprep.subr.mxu0 0.0
    %113 = vmatpush1.msra.mxu0 0.0
    %114 = vmatprep.subr.mxu0 0.0
    %115 = vmatpush1.msra.mxu0 0.0
    %116 = vmatprep.subr.mxu0 0.0
    %117 = vmatpush1.msra.mxu0 0.0
    %118 = vmatprep.subr.mxu0 0.0
    %119 = vmatpush1.msra.mxu0 0.0
    %120 = vmatprep.subr.mxu0 0.0
    %121 = vmatpush1.msra.mxu0 0.0
    %122 = vmatprep.subr.mxu0 0.0
    %123 = vmatpush1.msra.mxu0 0.0
    %124 = vmatprep.mubr.f32.mxu0 0.0
    %125 = vmatmul.mubr.f32.gmra.mrb[0].mxu0 %v54
    %v126 = vpop.f32.mrb[0].mxu0
    %v127 = vadd.f32 0.0, %v126
    %v128 = vpop.f32.mrb[0].mxu0
    %129 = vdwg.mxu0
    %vm130 = vcmask 64512
    %v132 = vsel %vm130, %v48, 0
    %134 = vmatprep.subr.mxu0 0.0
    %135 = vmatpush1.msra.mxu0 %v49
    %136 = vmatprep.subr.mxu0 0.0
    %137 = vmatpush1.msra.mxu0 0.0
    %138 = vmatprep.subr.mxu0 0.0
    %139 = vmatpush1.msra.mxu0 0.0
    %140 = vmatprep.subr.mxu0 0.0
    %141 = vmatpush1.msra.mxu0 0.0
    %142 = vmatprep.subr.mxu0 0.0
    %143 = vmatpush1.msra.mxu0 0.0
    %144 = vmatprep.subr.mxu0 0.0
    %145 = vmatpush1.msra.mxu0 0.0
    %146 = vmatprep.subr.mxu0 0.0
    %147 = vmatpush1.msra.mxu0 0.0
    %148 = vmatprep.subr.mxu0 0.0
    %149 = vmatpush1.msra.mxu0 0.0
    %150 = vmatprep.subr.mxu0 0.0
    %151 = vmatpush1.msra.mxu0 0.0
    %152 = vmatprep.subr.mxu0 0.0
    %153 = vmatpush1.msra.mxu0 0.0
    %154 = vmatprep.subr.mxu0 0.0
    %155 = vmatpush1.msra.mxu0 0.0
    %156 = vmatprep.subr.mxu0 0.0
    %157 = vmatpush1.msra.mxu0 0.0
    %158 = vmatprep.subr.mxu0 0.0
    %159 = vmatpush1.msra.mxu0 0.0
    %160 = vmatprep.subr.mxu0 0.0
    %161 = vmatpush1.msra.mxu0 0.0
    %162 = vmatprep.subr.mxu0 0.0
    %163 = vmatpush1.msra.mxu0 0.0
    %164 = vmatprep.subr.mxu0 0.0
    %165 = vmatpush1.msra.mxu0 0.0
    %166 = vmatprep.subr.mxu0 0.0
    %167 = vmatpush1.msra.mxu0 0.0
    %168 = vmatprep.subr.mxu0 0.0
    %169 = vmatpush1.msra.mxu0 0.0
    %170 = vmatprep.subr.mxu0 0.0
    %171 = vmatpush1.msra.mxu0 0.0
    %172 = vmatprep.subr.mxu0 0.0
    %173 = vmatpush1.msra.mxu0 0.0
    %174 = vmatprep.subr.mxu0 0.0
    %175 = vmatpush1.msra.mxu0 0.0
    %176 = vmatprep.subr.mxu0 0.0
    %177 = vmatpush1.msra.mxu0 0.0
    %178 = vmatprep.subr.mxu0 0.0
    %179 = vmatpush1.msra.mxu0 0.0
    %180 = vmatprep.subr.mxu0 0.0
    %181 = vmatpush1.msra.mxu0 0.0
    %182 = vmatprep.subr.mxu0 0.0
    %183 = vmatpush1.msra.mxu0 0.0
    %184 = vmatprep.subr.mxu0 0.0
    %185 = vmatpush1.msra.mxu0 0.0
    %186 = vmatprep.subr.mxu0 0.0
    %187 = vmatpush1.msra.mxu0 0.0
    %188 = vmatprep.subr.mxu0 0.0
    %189 = vmatpush1.msra.mxu0 0.0
    %190 = vmatprep.subr.mxu0 0.0
    %191 = vmatpush1.msra.mxu0 0.0
    %192 = vmatprep.subr.mxu0 0.0
    %193 = vmatpush1.msra.mxu0 0.0
    %194 = vmatprep.subr.mxu0 0.0
    %195 = vmatpush1.msra.mxu0 0.0
    %196 = vmatprep.subr.mxu0 0.0
    %197 = vmatpush1.msra.mxu0 0.0
    %198 = vmatprep.mubr.f32.mxu0 0.0
    %199 = vmatmul.mubr.f32.gmra.mrb[0].mxu0 %v132
    %v200 = vpop.f32.mrb[0].mxu0
    %v201 = vadd.f32 %v127, %v200
    %v202 = vpop.f32.mrb[0].mxu0
    %203 = vdwg.mxu0
    %v204 = vld [vmem:[%s4] sm:$0x1]
    %v206 = vlaneseq
    %v207 = vshrl.u32 %v206, 7
    %v208 = vsub.s32 0, %v207
    %v209 = vrot.slane %v204, %v208
    %v211 = vadd.f32 %v201, %v209
    %v212 = vmax.f32 %v211, 0.0
    %v213 = vld [vmem:[#allocation3] sm:$0xff]
    %v214 = vld [vmem:[#allocation3 + $0x8] sm:$0xff]
    %v215 = vld [vmem:[#allocation3 + $0x10] sm:$0xff]
    %v216 = vld [vmem:[#allocation3 + $0x18] sm:$0xff]
    %v217 = vld [vmem:[%s6] sm:$0x1]
    %v219 = vlaneseq
    %v220 = vshrl.u32 %v219, 7
    %v221 = vsub.s32 0, %v220
    %v222 = vrot.slane %v217, %v221
    %vm224 = vcmask 261120
    %v226 = vsel %vm224, %v212, 0
    %228 = vmatprep.subr.mxu0 0.0
    %229 = vmatpush1.msra.mxu0 %v213
    %230 = vmatprep.subr.mxu0 0.0
    %231 = vmatpush1.msra.mxu0 %v214
    %232 = vmatprep.subr.mxu0 0.0
    %233 = vmatpush1.msra.mxu0 %v215
    %234 = vmatprep.subr.mxu0 0.0
    %235 = vmatpush1.msra.mxu0 %v216
    %236 = vmatprep.subr.mxu0 0.0
    %237 = vmatpush1.msra.mxu0 0.0
    %238 = vmatprep.subr.mxu0 0.0
    %239 = vmatpush1.msra.mxu0 0.0
    %240 = vmatprep.subr.mxu0 0.0
    %241 = vmatpush1.msra.mxu0 0.0
    %242 = vmatprep.subr.mxu0 0.0
    %243 = vmatpush1.msra.mxu0 0.0
    %244 = vmatprep.subr.mxu0 0.0
    %245 = vmatpush1.msra.mxu0 0.0
    %246 = vmatprep.subr.mxu0 0.0
    %247 = vmatpush1.msra.mxu0 0.0
    %248 = vmatprep.subr.mxu0 0.0
    %249 = vmatpush1.msra.mxu0 0.0
    %250 = vmatprep.subr.mxu0 0.0
    %251 = vmatpush1.msra.mxu0 0.0
    %252 = vmatprep.subr.mxu0 0.0
    %253 = vmatpush1.msra.mxu0 0.0
    %254 = vmatprep.subr.mxu0 0.0
    %255 = vmatpush1.msra.mxu0 0.0
    %256 = vmatprep.subr.mxu0 0.0
    %257 = vmatpush1.msra.mxu0 0.0
    %258 = vmatprep.subr.mxu0 0.0
    %259 = vmatpush1.msra.mxu0 0.0
    %260 = vmatprep.subr.mxu0 0.0
    %261 = vmatpush1.msra.mxu0 0.0
    %262 = vmatprep.subr.mxu0 0.0
    %263 = vmatpush1.msra.mxu0 0.0
    %264 = vmatprep.subr.mxu0 0.0
    %265 = vmatpush1.msra.mxu0 0.0
    %266 = vmatprep.subr.mxu0 0.0
    %267 = vmatpush1.msra.mxu0 0.0
    %268 = vmatprep.subr.mxu0 0.0
    %269 = vmatpush1.msra.mxu0 0.0
    %270 = vmatprep.subr.mxu0 0.0
    %271 = vmatpush1.msra.mxu0 0.0
    %272 = vmatprep.subr.mxu0 0.0
    %273 = vmatpush1.msra.mxu0 0.0
    %274 = vmatprep.subr.mxu0 0.0
    %275 = vmatpush1.msra.mxu0 0.0
    %276 = vmatprep.subr.mxu0 0.0
    %277 = vmatpush1.msra.mxu0 0.0
    %278 = vmatprep.subr.mxu0 0.0
    %279 = vmatpush1.msra.mxu0 0.0
    %280 = vmatprep.subr.mxu0 0.0
    %281 = vmatpush1.msra.mxu0 0.0
    %282 = vmatprep.subr.mxu0 0.0
    %283 = vmatpush1.msra.mxu0 0.0
    %284 = vmatprep.subr.mxu0 0.0
    %285 = vmatpush1.msra.mxu0 0.0
    %286 = vmatprep.subr.mxu0 0.0
    %287 = vmatpush1.msra.mxu0 0.0
    %288 = vmatprep.subr.mxu0 0.0
    %289 = vmatpush1.msra.mxu0 0.0
    %290 = vmatprep.subr.mxu0 0.0
    %291 = vmatpush1.msra.mxu0 0.0
    %292 = vmatprep.mubr.f32.mxu0 0.0
    %293 = vmatmul.mubr.f32.gmra.mrb[0].mxu0 %v226
    %v294 = vpop.f32.mrb[0].mxu0
    %v295 = vadd.f32 %v222, %v294
    %v296 = vpop.f32.mrb[0].mxu0
    %297 = vdwg.mxu0
    %v298 = vmax.f32 %v295, 0.0
    %v299 = vld [vmem:[%s7] sm:$0x1]
    %v301 = vlaneseq
    %v302 = vshrl.u32 %v301, 7
    %v303 = vsub.s32 0, %v302
    %v304 = vrot.slane %v299, %v303
    %v306 = vmul.f32 %v298, %v304
    %vm307 = vcmask 257024
    %v308 = vsel %vm307, %v306, 0.0
    %309 = vadd.xlane.f32.xlu0 %v308
    %v310 = vpop.xlane.xlu0 %309
    %s311 = sld [smem:[#allocation2]]
    %v312 = vstv %s311
    %v313 = vadd.f32 %v310, %v312
    %v315 = vlaneseq
    %v316 = vand.u32 %v315, 127
    %v317 = vlaneseq
    %v318 = vshrl.u32 %v317, 7
    %v319 = vsub.s32 %v316, %v318
    %v320 = vrot.slane %v313, %v319
    %vm322 = vcmask 24576
    %323 = vst.msk [vmem:[#allocation6] sm:$0x1] %vm322, %v320
    // Predicated region
    $region42: #{tpu_custom_call.1} parent=1 // pred_check
      _
    $region43: #{tpu_custom_call.1} parent=1 // pred_check_branch
      %325 = sbr.rel (0) target = $region45
    $region44: #{tpu_custom_call.1} parent=1 // pred_region
      %s327 = ssub.s32 16, 16
      %328 = vsyncadd [#allocation5], %s327
      %s330 = sshll.u32 [#allocation6], 4
      %s331 = int_to_ptr.vmem [resolvable:$true] %s330
      %333 = dma.vmem_to_hbm [thread:$0]  %s331, 16, %s9, [#allocation5]
    $region45: #{tpu_custom_call.1} parent=1 // pred_fallthru
      _
    // Predicated region
    $region46: #{tpu_custom_call.1} parent=1 // pred_check
      _
    $region47: #{tpu_custom_call.1} parent=1 // pred_check_branch
      %335 = sbr.rel (0) target = $region49
    $region48: #{tpu_custom_call.1} parent=1 // pred_region
      %336 = dma.done [#allocation5], 16
    $region49: #{tpu_custom_call.1} parent=1 // pred_fallthru
      _
    %337 = vsyncpa [#allocation4], 1
    %338 = vsyncpa [#allocation5], 1

</llo_original>
